<compile_context>
chip_gen: v6e
topology: v6e:2x2x1
jax: 0.10.0
libtpu: 0.0.40
codegen_flags: <defaults>
</compile_context>

<pallas_src>
import jax
import jax.numpy as jnp
from jax.experimental import pallas as pl
from jax.experimental.pallas import tpu as pltpu


def _mlp_kernel(x_ref, w1_ref, b1_ref, w2_ref, b2_ref,
                w3_ref, b3_ref, w4_ref, b4_ref, o_ref):
    # Layer 1: Linear(in, 128) -> (dropout=id) -> ReLU.  bf16 operands, f32 acc.
    h = jnp.dot(x_ref[...], w1_ref[...],
                preferred_element_type=jnp.float32) + b1_ref[...]
    h = jnp.maximum(h, 0.0)
    # Layer 2: Linear(128, 256) -> (dropout=id) -> ReLU
    h = jnp.dot(h.astype(jnp.bfloat16), w2_ref[...],
                preferred_element_type=jnp.float32) + b2_ref[...]
    h = jnp.maximum(h, 0.0)
    # Layer 3: Linear(256, 128) -> (dropout=id) -> ReLU
    h = jnp.dot(h.astype(jnp.bfloat16), w3_ref[...],
                preferred_element_type=jnp.float32) + b3_ref[...]
    h = jnp.maximum(h, 0.0)
    # Layer 4: Linear(128, out_pad)  -- out columns padded to 128 lanes
    out = jnp.dot(h.astype(jnp.bfloat16), w4_ref[...],
                  preferred_element_type=jnp.float32) + b4_ref[...]
    o_ref[...] = out.astype(o_ref.dtype)


def _round_up(n, m):
    return ((n + m - 1) // m) * m


def network_forward(x, params, *, tile_m=512):
    """Run the fused MLP kernel.  x: (B, inputSize) float32 -> (B, outputSize) f32."""
    (w1, b1), (w2, b2), (w3, b3), (w4, b4) = params
    B, in_size = x.shape
    out_size = w4.shape[1]

    # --- Lane-dense output: pad the last layer to a multiple of 128 lanes.
    out_pad = _round_up(max(out_size, 128), 128)
    if out_pad != out_size:
        w4 = jnp.pad(w4, ((0, 0), (0, out_pad - out_size)))
        b4 = jnp.pad(b4, ((0, 0), (0, out_pad - out_size)))

    # --- Batch tiling: big M tiles (multiple of 16 for bf16 sublane packing),
    #     batch padded up to a multiple of the tile.
    tm = min(tile_m, _round_up(B, 16))
    tm = _round_up(tm, 16)
    b_pad = _round_up(B, tm)
    if b_pad != B:
        x = jnp.pad(x, ((0, b_pad - B), (0, 0)))

    # bf16 matmul operands; biases stay f32 (f32 accumulate + epilogue).
    xb = x.astype(jnp.bfloat16)
    wb = [w.astype(jnp.bfloat16) for w in (w1, w2, w3, w4)]
    bs = [b.astype(jnp.float32) for b in (b1, b2, b3, b4)]

    def const_spec(arr):
        # Weights/biases: whole array, same block every grid step (VMEM-resident).
        return pl.BlockSpec(arr.shape, lambda i: (0, 0))

    grid = (b_pad // tm,)
    out = pl.pallas_call(
        _mlp_kernel,
        out_shape=jax.ShapeDtypeStruct((b_pad, out_pad), jnp.float32),
        grid=grid,
        in_specs=[
            pl.BlockSpec((tm, in_size), lambda i: (i, 0)),
            const_spec(wb[0]), const_spec(bs[0]),
            const_spec(wb[1]), const_spec(bs[1]),
            const_spec(wb[2]), const_spec(bs[2]),
            const_spec(wb[3]), const_spec(bs[3]),
        ],
        out_specs=pl.BlockSpec((tm, out_pad), lambda i: (i, 0)),
        compiler_params=pltpu.CompilerParams(
            dimension_semantics=("parallel",)),
    )(xb, wb[0], bs[0], wb[1], bs[1], wb[2], bs[2], wb[3], bs[3])

    return out[:B, :out_size]


def init_params(key, input_size, output_size):
    """Deterministic PyTorch-style (uniform +/- 1/sqrt(fan_in)) init.

    Weights stored as (in_features, out_features) so y = x @ W + b.
    """
    dims = [(input_size, 128), (128, 256), (256, 128), (128, output_size)]
    params = []
    for (fan_in, fan_out) in dims:
        key, kw, kb = jax.random.split(key, 3)
        bound = 1.0 / jnp.sqrt(float(fan_in))
        w = jax.random.uniform(kw, (fan_in, fan_out), jnp.float32,
                               minval=-bound, maxval=bound)
        b = jax.random.uniform(kb, (1, fan_out), jnp.float32,
                               minval=-bound, maxval=bound)
        params.append((w, b))
    return params


def reference_forward(x, params):
    """Pure-JAX reference mirroring the kernel's numerics (bf16 operands, f32 acc)."""
    h = x.astype(jnp.bfloat16)
    n = len(params)
    for i, (w, b) in enumerate(params):
        h = jnp.dot(h, w.astype(jnp.bfloat16),
                    preferred_element_type=jnp.float32) + b
        if i < n - 1:
            h = jnp.maximum(h, 0.0).astype(jnp.bfloat16)
    return h


if __name__ == "__main__":
    input_size = 32
    output_size = 16
    batch = 50  # deliberately not a multiple of the tile -> exercises padding

    key = jax.random.PRNGKey(0)
    key, kx = jax.random.split(key)
    x = jax.random.normal(kx, (batch, input_size), jnp.float32)
    params = init_params(key, input_size, output_size)

    # Small tile in the demo so the grid actually iterates (50 -> pad 64 -> 4 steps).
    out = network_forward(x, params, tile_m=16)
    out = jax.block_until_ready(out)

    ref = reference_forward(x, params)
    assert out.shape == (batch, output_size)
    max_err = float(jnp.max(jnp.abs(out - ref)))
    assert jnp.allclose(out, ref, atol=1e-2, rtol=1e-2), max_err

    print("KERNEL_OK")
</pallas_src>

<mosaic_0001>
module attributes {stable_mosaic.version = 11 : i64} {
  func.func @_mlp_kernel(%arg0: i32, %arg1: memref<16x32xbf16, #tpu.memory_space<vmem>>, %arg2: memref<32x128xbf16, #tpu.memory_space<vmem>>, %arg3: memref<1x128xf32, #tpu.memory_space<vmem>>, %arg4: memref<128x256xbf16, #tpu.memory_space<vmem>>, %arg5: memref<1x256xf32, #tpu.memory_space<vmem>>, %arg6: memref<256x128xbf16, #tpu.memory_space<vmem>>, %arg7: memref<1x128xf32, #tpu.memory_space<vmem>>, %arg8: memref<128x128xbf16, #tpu.memory_space<vmem>>, %arg9: memref<1x128xf32, #tpu.memory_space<vmem>>, %arg10: memref<16x128xf32, #tpu.memory_space<vmem>>) attributes {dimension_semantics = [#tpu.dimension_semantics<parallel>], iteration_bounds = array<i64: 4>, scalar_prefetch = 0 : i64, scratch_operands = 0 : i64, tpu.core_type = #tpu.core_type<tc>, window_params = [{transform_indices = @transform_0, window_bounds = array<i64: 16, 32>}, {pipeline_mode = #tpu.pipeline_mode<synchronous>, transform_indices = @transform_1, window_bounds = array<i64: 32, 128>}, {pipeline_mode = #tpu.pipeline_mode<synchronous>, transform_indices = @transform_2, window_bounds = array<i64: 1, 128>}, {pipeline_mode = #tpu.pipeline_mode<synchronous>, transform_indices = @transform_3, window_bounds = array<i64: 128, 256>}, {pipeline_mode = #tpu.pipeline_mode<synchronous>, transform_indices = @transform_4, window_bounds = array<i64: 1, 256>}, {pipeline_mode = #tpu.pipeline_mode<synchronous>, transform_indices = @transform_5, window_bounds = array<i64: 256, 128>}, {pipeline_mode = #tpu.pipeline_mode<synchronous>, transform_indices = @transform_6, window_bounds = array<i64: 1, 128>}, {pipeline_mode = #tpu.pipeline_mode<synchronous>, transform_indices = @transform_7, window_bounds = array<i64: 128, 128>}, {pipeline_mode = #tpu.pipeline_mode<synchronous>, transform_indices = @transform_8, window_bounds = array<i64: 1, 128>}, {transform_indices = @transform_9, window_bounds = array<i64: 16, 128>}]} {
    %c0 = arith.constant 0 : index
    %c0_0 = arith.constant 0 : index
    %0 = vector.load %arg1[%c0, %c0_0] : memref<16x32xbf16, #tpu.memory_space<vmem>>, vector<16x32xbf16>
    %c0_1 = arith.constant 0 : index
    %c0_2 = arith.constant 0 : index
    %1 = vector.load %arg2[%c0_1, %c0_2] : memref<32x128xbf16, #tpu.memory_space<vmem>>, vector<32x128xbf16>
    %cst = arith.constant dense<0.000000e+00> : vector<16x128xf32>
    %2 = tpu.matmul %0, %1, %cst {dimension_numbers = #tpu.dot_dimension_numbers<[1], [0], [0], [1], [0, 0, 1, 1], [], []>} : vector<16x32xbf16>, vector<32x128xbf16>, vector<16x128xf32> -> vector<16x128xf32>
    %c0_3 = arith.constant 0 : index
    %c0_4 = arith.constant 0 : index
    %3 = vector.load %arg3[%c0_3, %c0_4] : memref<1x128xf32, #tpu.memory_space<vmem>>, vector<1x128xf32>
    %4 = vector.broadcast %3 : vector<1x128xf32> to vector<16x128xf32>
    %5 = arith.addf %2, %4 : vector<16x128xf32>
    %cst_5 = arith.constant 0.000000e+00 : f32
    %6 = vector.broadcast %cst_5 : f32 to vector<16x128xf32>
    %7 = arith.maximumf %5, %6 : vector<16x128xf32>
    %8 = arith.truncf %7 : vector<16x128xf32> to vector<16x128xbf16>
    %c0_6 = arith.constant 0 : index
    %c0_7 = arith.constant 0 : index
    %9 = vector.load %arg4[%c0_6, %c0_7] : memref<128x256xbf16, #tpu.memory_space<vmem>>, vector<128x256xbf16>
    %cst_8 = arith.constant dense<0.000000e+00> : vector<16x256xf32>
    %10 = tpu.matmul %8, %9, %cst_8 {dimension_numbers = #tpu.dot_dimension_numbers<[1], [0], [0], [1], [0, 0, 1, 1], [], []>} : vector<16x128xbf16>, vector<128x256xbf16>, vector<16x256xf32> -> vector<16x256xf32>
    %c0_9 = arith.constant 0 : index
    %c0_10 = arith.constant 0 : index
    %11 = vector.load %arg5[%c0_9, %c0_10] : memref<1x256xf32, #tpu.memory_space<vmem>>, vector<1x256xf32>
    %12 = vector.broadcast %11 : vector<1x256xf32> to vector<16x256xf32>
    %13 = arith.addf %10, %12 : vector<16x256xf32>
    %cst_11 = arith.constant 0.000000e+00 : f32
    %14 = vector.broadcast %cst_11 : f32 to vector<16x256xf32>
    %15 = arith.maximumf %13, %14 : vector<16x256xf32>
    %16 = arith.truncf %15 : vector<16x256xf32> to vector<16x256xbf16>
    %c0_12 = arith.constant 0 : index
    %c0_13 = arith.constant 0 : index
    %17 = vector.load %arg6[%c0_12, %c0_13] : memref<256x128xbf16, #tpu.memory_space<vmem>>, vector<256x128xbf16>
    %cst_14 = arith.constant dense<0.000000e+00> : vector<16x128xf32>
    %18 = tpu.matmul %16, %17, %cst_14 {dimension_numbers = #tpu.dot_dimension_numbers<[1], [0], [0], [1], [0, 0, 1, 1], [], []>} : vector<16x256xbf16>, vector<256x128xbf16>, vector<16x128xf32> -> vector<16x128xf32>
    %c0_15 = arith.constant 0 : index
    %c0_16 = arith.constant 0 : index
    %19 = vector.load %arg7[%c0_15, %c0_16] : memref<1x128xf32, #tpu.memory_space<vmem>>, vector<1x128xf32>
    %20 = vector.broadcast %19 : vector<1x128xf32> to vector<16x128xf32>
    %21 = arith.addf %18, %20 : vector<16x128xf32>
    %cst_17 = arith.constant 0.000000e+00 : f32
    %22 = vector.broadcast %cst_17 : f32 to vector<16x128xf32>
    %23 = arith.maximumf %21, %22 : vector<16x128xf32>
    %24 = arith.truncf %23 : vector<16x128xf32> to vector<16x128xbf16>
    %c0_18 = arith.constant 0 : index
    %c0_19 = arith.constant 0 : index
    %25 = vector.load %arg8[%c0_18, %c0_19] : memref<128x128xbf16, #tpu.memory_space<vmem>>, vector<128x128xbf16>
    %cst_20 = arith.constant dense<0.000000e+00> : vector<16x128xf32>
    %26 = tpu.matmul %24, %25, %cst_20 {dimension_numbers = #tpu.dot_dimension_numbers<[1], [0], [0], [1], [0, 0, 1, 1], [], []>} : vector<16x128xbf16>, vector<128x128xbf16>, vector<16x128xf32> -> vector<16x128xf32>
    %c0_21 = arith.constant 0 : index
    %c0_22 = arith.constant 0 : index
    %27 = vector.load %arg9[%c0_21, %c0_22] : memref<1x128xf32, #tpu.memory_space<vmem>>, vector<1x128xf32>
    %28 = vector.broadcast %27 : vector<1x128xf32> to vector<16x128xf32>
    %29 = arith.addf %26, %28 : vector<16x128xf32>
    %c0_23 = arith.constant 0 : index
    %c0_24 = arith.constant 0 : index
    %30 = vector.load %arg10[%c0_23, %c0_24] : memref<16x128xf32, #tpu.memory_space<vmem>>, vector<16x128xf32>
    tpu.vector_store %arg10[%c0_23, %c0_24], %29 {strides = array<i32>} : memref<16x128xf32, #tpu.memory_space<vmem>>, vector<16x128xf32>,
    return
  }
  func.func @transform_0(%arg0: i32) -> (i32, i32) {
    %c0_i32 = arith.constant 0 : i32
    %c0_i32_0 = arith.constant 0 : i32
    return %arg0, %c0_i32 : i32, i32
  }
  func.func @transform_1(%arg0: i32) -> (i32, i32) {
    %c0_i32 = arith.constant 0 : i32
    %c0_i32_0 = arith.constant 0 : i32
    %c0_i32_1 = arith.constant 0 : i32
    return %c0_i32, %c0_i32_0 : i32, i32
  }
  func.func @transform_2(%arg0: i32) -> (i32, i32) {
    %c0_i32 = arith.constant 0 : i32
    %c0_i32_0 = arith.constant 0 : i32
    %c0_i32_1 = arith.constant 0 : i32
    return %c0_i32, %c0_i32_0 : i32, i32
  }
  func.func @transform_3(%arg0: i32) -> (i32, i32) {
    %c0_i32 = arith.constant 0 : i32
    %c0_i32_0 = arith.constant 0 : i32
    %c0_i32_1 = arith.constant 0 : i32
    return %c0_i32, %c0_i32_0 : i32, i32
  }
  func.func @transform_4(%arg0: i32) -> (i32, i32) {
    %c0_i32 = arith.constant 0 : i32
    %c0_i32_0 = arith.constant 0 : i32
    %c0_i32_1 = arith.constant 0 : i32
    return %c0_i32, %c0_i32_0 : i32, i32
  }
  func.func @transform_5(%arg0: i32) -> (i32, i32) {
    %c0_i32 = arith.constant 0 : i32
    %c0_i32_0 = arith.constant 0 : i32
    %c0_i32_1 = arith.constant 0 : i32
    return %c0_i32, %c0_i32_0 : i32, i32
  }
  func.func @transform_6(%arg0: i32) -> (i32, i32) {
    %c0_i32 = arith.constant 0 : i32
    %c0_i32_0 = arith.constant 0 : i32
    %c0_i32_1 = arith.constant 0 : i32
    return %c0_i32, %c0_i32_0 : i32, i32
  }
  func.func @transform_7(%arg0: i32) -> (i32, i32) {
    %c0_i32 = arith.constant 0 : i32
    %c0_i32_0 = arith.constant 0 : i32
    %c0_i32_1 = arith.constant 0 : i32
    return %c0_i32, %c0_i32_0 : i32, i32
  }
  func.func @transform_8(%arg0: i32) -> (i32, i32) {
    %c0_i32 = arith.constant 0 : i32
    %c0_i32_0 = arith.constant 0 : i32
    %c0_i32_1 = arith.constant 0 : i32
    return %c0_i32, %c0_i32_0 : i32, i32
  }
  func.func @transform_9(%arg0: i32) -> (i32, i32) {
    %c0_i32 = arith.constant 0 : i32
    %c0_i32_0 = arith.constant 0 : i32
    return %arg0, %c0_i32 : i32, i32
  }
}

</mosaic_0001>

<llo_original>
// kernel: tpu_custom_call.1
$region0: #{tpu_custom_call.1}
  #allocation0 [shape = 'u32[]', space=smem, size = 0x4, offset = 0x4, fixed_abs, tag = 'smem constant byte address 0x4 - core index']
  #allocation1 [shape = 'u32[144,128]{1,0:T(1,128)}', space=vmem, size = 0x12000, scoped, tag = 'internal scratch']
  %s0 = inlined_call_operand.vmem [shape: bf16[64,32], index: 0, kind: input, shape index: {}]
  %s1 = inlined_call_operand.vmem [shape: bf16[32,128], index: 1, kind: input, shape index: {}]
  %s2 = inlined_call_operand.vmem [shape: f32[1,128], index: 2, kind: input, shape index: {}]
  %s3 = inlined_call_operand.hbm [shape: bf16[128,256], index: 3, kind: input, shape index: {}]
  %s4 = inlined_call_operand.vmem [shape: f32[1,256], index: 4, kind: input, shape index: {}]
  %s5 = inlined_call_operand.hbm [shape: bf16[256,128], index: 5, kind: input, shape index: {}]
  %s6 = inlined_call_operand.vmem [shape: f32[1,128], index: 6, kind: input, shape index: {}]
  %s7 = inlined_call_operand.hbm [shape: bf16[128,128], index: 7, kind: input, shape index: {}]
  %s8 = inlined_call_operand.vmem [shape: f32[1,128], index: 8, kind: input, shape index: {}]
  %s9 = inlined_call_operand.hbm [shape: f32[64,128], index: 9, kind: output, shape index: {}]
  %s10 = sld [smem:[#allocation0]]
  $region81: #{tpu_custom_call.1} parent=0
    _
  %s12 = ssub.s32 1, %s10
  %s13 = scalar_select 0, %s12, %s10
  $region1: #{tpu_custom_call.1} parent=0
    #allocation2 [shape = 'u8[65536]{0}', space=vmem, size = 0x10000, scoped, tag = 'input window, operand 3, single buffered']
    #allocation3 [shape = 's32[2]{0}', space=sflag, size = 0x8, scoped, tag = 'scoped memory for tpu_custom_call.1']
    #allocation4 [shape = 's32[2]{0}', space=sflag, size = 0x8, scoped, tag = 'scoped memory for tpu_custom_call.1']
    #allocation5 [shape = 'u8[65536]{0}', space=vmem, size = 0x10000, scoped, tag = 'input window, operand 5, single buffered']
    #allocation6 [shape = 's32[1]{0}', space=sflag, size = 0x4, scoped, tag = 'scoped memory for tpu_custom_call.1']
    #allocation7 [shape = 'u8[32768]{0}', space=vmem, size = 0x8000, scoped, tag = 'input window, operand 7, single buffered']
    #allocation8 [shape = 'u8[16384]{0}', space=vmem, size = 0x4000, scoped, tag = 'output window, operand 0']
    %14 = vsyncpa [#allocation3], 0
    %15 = vsyncpa [#allocation6], 0
    %16 = vsyncpa [#allocation4], 0
    %s17 = scalar_lea.sflag [#allocation4], 1
    %18 = vsyncpa %s17, 0
    loop: start=0, step=1, limit=6
    $region2: #{tpu_custom_call.1} parent=1 // loop_pre_header
      _
    $region3: #{tpu_custom_call.1} parent=1 // loop_header
      %s20 = sphi 0, %s24
      %p21 = scmp.ge.s32.totalorder %s20, 6
      %s30 = sphi 0, %s32
      %s33 = sphi 0, %s30
      %s34 = sphi 0, %s33
      %s50 = sphi 0, %s34
      %s54 = sphi 0, %s54
      %s56 = sphi 0, %s54
      %s57 = sphi 0, %s56
      %s71 = sphi 0, %s57
      %s75 = sphi 0, %s75
      %s77 = sphi 0, %s75
      %s78 = sphi 0, %s77
      %s92 = sphi 0, %s78
      %s96 = sphi 0, %s96
      %s98 = sphi 0, %s96
      %s99 = sphi 0, %s98
      %s113 = sphi 0, %s99
      %s117 = sphi 0, %s117
      %s119 = sphi 0, %s117
      %s120 = sphi 0, %s119
      %s134 = sphi 0, %s120
      %s138 = sphi 0, %s138
      %s140 = sphi 0, %s138
      %s141 = sphi 0, %s140
      %s155 = sphi 0, %s141
      %s159 = sphi 0, %s159
      %s161 = sphi 0, %s159
      %s162 = sphi 0, %s161
      %s176 = sphi 0, %s162
      %s180 = sphi 0, %s180
      %s182 = sphi 0, %s180
      %s183 = sphi 0, %s182
      %s197 = sphi 0, %s183
      %s201 = sphi 0, %s201
      %s203 = sphi 0, %s201
      %s204 = sphi 0, %s203
      %s218 = sphi 0, %s204
      %s224 = sphi 0, %s226
      %s227 = sphi 0, %s224
      %s228 = sphi 0, %s227
      %s244 = sphi 0, %s228
    $region4: #{tpu_custom_call.1} parent=1 // loop_header_branch
      %23 = sbr.rel (%p21) target = $region8
    $region5: #{tpu_custom_call.1} parent=1 // loop_body
      %s25 = ssub.s32 %s20, 1
      %s26 = ssub.s32 %s20, 2
      %s27 = sadd.s32 %s20, 1
      %s28 = ssub.s32 %s20, %s27
      %p29 = scmp.eq.s32.totalorder %s28, 0
      %s31 = sadd.s32 %s30, 1
      %s32 = scalar_select %p29, %s30, %s31
      %p35 = pneg %p29
      %p36 = scmp.eq.s32.totalorder %s20, 3
      %p37 = por %p35, %p36
      %p38 = scmp.ne.s32.totalorder %s30, %s33
      %p39 = scmp.eq.s32.totalorder %s20, 0
      %p40 = por %p38, %p39
      %p41 = scmp.ne.s32.totalorder %s30, %s33
      %p42 = scmp.eq.s32.totalorder %s25, 3
      %p43 = por %p41, %p42
      %p44 = scmp.ne.s32.totalorder %s33, %s34
      %p45 = scmp.eq.s32.totalorder %s25, 0
      %p46 = por %p44, %p45
      %p47 = scmp.ne.s32.totalorder %s33, %s34
      %p48 = scmp.eq.s32.totalorder %s26, 3
      %p49 = por %p47, %p48
      %p51 = scmp.ne.s32.totalorder %s34, %s50
      %p52 = scmp.eq.s32.totalorder %s26, 0
      %p53 = por %p51, %p52
      %s55 = sadd.s32 %s54, 1
      %p58 = scmp.eq.s32.totalorder %s20, 3
      %p59 = scmp.ne.s32.totalorder %s54, %s56
      %p60 = scmp.eq.s32.totalorder %s20, 0
      %p61 = por %p59, %p60
      %p62 = scmp.ne.s32.totalorder %s54, %s56
      %p63 = scmp.eq.s32.totalorder %s25, 3
      %p64 = por %p62, %p63
      %p65 = scmp.ne.s32.totalorder %s56, %s57
      %p66 = scmp.eq.s32.totalorder %s25, 0
      %p67 = por %p65, %p66
      %p68 = scmp.ne.s32.totalorder %s56, %s57
      %p69 = scmp.eq.s32.totalorder %s26, 3
      %p70 = por %p68, %p69
      %p72 = scmp.ne.s32.totalorder %s57, %s71
      %p73 = scmp.eq.s32.totalorder %s26, 0
      %p74 = por %p72, %p73
      %s76 = sadd.s32 %s75, 1
      %p79 = scmp.eq.s32.totalorder %s20, 3
      %p80 = scmp.ne.s32.totalorder %s75, %s77
      %p81 = scmp.eq.s32.totalorder %s20, 0
      %p82 = por %p80, %p81
      %p83 = scmp.ne.s32.totalorder %s75, %s77
      %p84 = scmp.eq.s32.totalorder %s25, 3
      %p85 = por %p83, %p84
      %p86 = scmp.ne.s32.totalorder %s77, %s78
      %p87 = scmp.eq.s32.totalorder %s25, 0
      %p88 = por %p86, %p87
      %p89 = scmp.ne.s32.totalorder %s77, %s78
      %p90 = scmp.eq.s32.totalorder %s26, 3
      %p91 = por %p89, %p90
      %p93 = scmp.ne.s32.totalorder %s78, %s92
      %p94 = scmp.eq.s32.totalorder %s26, 0
      %p95 = por %p93, %p94
      %s97 = sadd.s32 %s96, 1
      %p100 = scmp.eq.s32.totalorder %s20, 3
      %p101 = scmp.ne.s32.totalorder %s96, %s98
      %p102 = scmp.eq.s32.totalorder %s20, 0
      %p103 = por %p101, %p102
      %p104 = scmp.ne.s32.totalorder %s96, %s98
      %p105 = scmp.eq.s32.totalorder %s25, 3
      %p106 = por %p104, %p105
      %p107 = scmp.ne.s32.totalorder %s98, %s99
      %p108 = scmp.eq.s32.totalorder %s25, 0
      %p109 = por %p107, %p108
      %p110 = scmp.ne.s32.totalorder %s98, %s99
      %p111 = scmp.eq.s32.totalorder %s26, 3
      %p112 = por %p110, %p111
      %p114 = scmp.ne.s32.totalorder %s99, %s113
      %p115 = scmp.eq.s32.totalorder %s26, 0
      %p116 = por %p114, %p115
      %s118 = sadd.s32 %s117, 1
      %p121 = scmp.eq.s32.totalorder %s20, 3
      %p122 = scmp.ne.s32.totalorder %s117, %s119
      %p123 = scmp.eq.s32.totalorder %s20, 0
      %p124 = por %p122, %p123
      %p125 = scmp.ne.s32.totalorder %s117, %s119
      %p126 = scmp.eq.s32.totalorder %s25, 3
      %p127 = por %p125, %p126
      %p128 = scmp.ne.s32.totalorder %s119, %s120
      %p129 = scmp.eq.s32.totalorder %s25, 0
      %p130 = por %p128, %p129
      %p131 = scmp.ne.s32.totalorder %s119, %s120
      %p132 = scmp.eq.s32.totalorder %s26, 3
      %p133 = por %p131, %p132
      %p135 = scmp.ne.s32.totalorder %s120, %s134
      %p136 = scmp.eq.s32.totalorder %s26, 0
      %p137 = por %p135, %p136
      %s139 = sadd.s32 %s138, 1
      %p142 = scmp.eq.s32.totalorder %s20, 3
      %p143 = scmp.ne.s32.totalorder %s138, %s140
      %p144 = scmp.eq.s32.totalorder %s20, 0
      %p145 = por %p143, %p144
      %p146 = scmp.ne.s32.totalorder %s138, %s140
      %p147 = scmp.eq.s32.totalorder %s25, 3
      %p148 = por %p146, %p147
      %p149 = scmp.ne.s32.totalorder %s140, %s141
      %p150 = scmp.eq.s32.totalorder %s25, 0
      %p151 = por %p149, %p150
      %p152 = scmp.ne.s32.totalorder %s140, %s141
      %p153 = scmp.eq.s32.totalorder %s26, 3
      %p154 = por %p152, %p153
      %p156 = scmp.ne.s32.totalorder %s141, %s155
      %p157 = scmp.eq.s32.totalorder %s26, 0
      %p158 = por %p156, %p157
      %s160 = sadd.s32 %s159, 1
      %p163 = scmp.eq.s32.totalorder %s20, 3
      %p164 = scmp.ne.s32.totalorder %s159, %s161
      %p165 = scmp.eq.s32.totalorder %s20, 0
      %p166 = por %p164, %p165
      %p167 = scmp.ne.s32.totalorder %s159, %s161
      %p168 = scmp.eq.s32.totalorder %s25, 3
      %p169 = por %p167, %p168
      %p170 = scmp.ne.s32.totalorder %s161, %s162
      %p171 = scmp.eq.s32.totalorder %s25, 0
      %p172 = por %p170, %p171
      %p173 = scmp.ne.s32.totalorder %s161, %s162
      %p174 = scmp.eq.s32.totalorder %s26, 3
      %p175 = por %p173, %p174
      %p177 = scmp.ne.s32.totalorder %s162, %s176
      %p178 = scmp.eq.s32.totalorder %s26, 0
      %p179 = por %p177, %p178
      %s181 = sadd.s32 %s180, 1
      %p184 = scmp.eq.s32.totalorder %s20, 3
      %p185 = scmp.ne.s32.totalorder %s180, %s182
      %p186 = scmp.eq.s32.totalorder %s20, 0
      %p187 = por %p185, %p186
      %p188 = scmp.ne.s32.totalorder %s180, %s182
      %p189 = scmp.eq.s32.totalorder %s25, 3
      %p190 = por %p188, %p189
      %p191 = scmp.ne.s32.totalorder %s182, %s183
      %p192 = scmp.eq.s32.totalorder %s25, 0
      %p193 = por %p191, %p192
      %p194 = scmp.ne.s32.totalorder %s182, %s183
      %p195 = scmp.eq.s32.totalorder %s26, 3
      %p196 = por %p194, %p195
      %p198 = scmp.ne.s32.totalorder %s183, %s197
      %p199 = scmp.eq.s32.totalorder %s26, 0
      %p200 = por %p198, %p199
      %s202 = sadd.s32 %s201, 1
      %p205 = scmp.eq.s32.totalorder %s20, 3
      %p206 = scmp.ne.s32.totalorder %s201, %s203
      %p207 = scmp.eq.s32.totalorder %s20, 0
      %p208 = por %p206, %p207
      %p209 = scmp.ne.s32.totalorder %s201, %s203
      %p210 = scmp.eq.s32.totalorder %s25, 3
      %p211 = por %p209, %p210
      %p212 = scmp.ne.s32.totalorder %s203, %s204
      %p213 = scmp.eq.s32.totalorder %s25, 0
      %p214 = por %p212, %p213
      %p215 = scmp.ne.s32.totalorder %s203, %s204
      %p216 = scmp.eq.s32.totalorder %s26, 3
      %p217 = por %p215, %p216
      %p219 = scmp.ne.s32.totalorder %s204, %s218
      %p220 = scmp.eq.s32.totalorder %s26, 0
      %p221 = por %p219, %p220
      %s222 = ssub.s32 %s20, %s27
      %p223 = scmp.eq.s32.totalorder %s222, 0
      %s225 = sadd.s32 %s224, 1
      %s226 = scalar_select %p223, %s224, %s225
      %p229 = pneg %p223
      %p230 = scmp.eq.s32.totalorder %s20, 3
      %p231 = por %p229, %p230
      %p232 = scmp.ne.s32.totalorder %s224, %s227
      %p233 = scmp.eq.s32.totalorder %s20, 0
      %p234 = por %p232, %p233
      %p235 = scmp.ne.s32.totalorder %s224, %s227
      %p236 = scmp.eq.s32.totalorder %s25, 3
      %p237 = por %p235, %p236
      %p238 = scmp.ne.s32.totalorder %s227, %s228
      %p239 = scmp.eq.s32.totalorder %s25, 0
      %p240 = por %p238, %p239
      %p241 = scmp.ne.s32.totalorder %s227, %s228
      %p242 = scmp.eq.s32.totalorder %s26, 3
      %p243 = por %p241, %p242
      %p245 = scmp.ne.s32.totalorder %s228, %s244
      %p246 = scmp.eq.s32.totalorder %s26, 0
      %p247 = por %p245, %p246
      %p248 = scmp.le.s32.totalorder 1, %s20
      %p249 = scmp.lt.s32.totalorder %s20, 5
      %p250 = pnand %p248, %p249
      %p251 = pneg %p250
      // Predicated region
      $region9: #{tpu_custom_call.1} parent=5 // pred_check
        _
      $region10: #{tpu_custom_call.1} parent=5 // pred_check_branch
        %253 = sbr.rel (%p250) target = $region12
      $region11: #{tpu_custom_call.1} parent=5 // pred_region
        %s254 = ssub.s32 %s20, 1
        // Predicated region
        $region13: #{tpu_custom_call.1} parent=11 // pred_check
          %p255 = pneg %p67
        $region14: #{tpu_custom_call.1} parent=11 // pred_check_branch
          %257 = sbr.rel (%p255) target = $region16
        $region15: #{tpu_custom_call.1} parent=11 // pred_region
          _
        $region16: #{tpu_custom_call.1} parent=11 // pred_fallthru
          _
        // Predicated region
        $region17: #{tpu_custom_call.1} parent=11 // pred_check
          %p258 = pneg %p88
        $region18: #{tpu_custom_call.1} parent=11 // pred_check_branch
          %260 = sbr.rel (%p258) target = $region20
        $region19: #{tpu_custom_call.1} parent=11 // pred_region
          _
        $region20: #{tpu_custom_call.1} parent=11 // pred_fallthru
          _
        // Predicated region
        $region21: #{tpu_custom_call.1} parent=11 // pred_check
          %p261 = pneg %p109
        $region22: #{tpu_custom_call.1} parent=11 // pred_check_branch
          %263 = sbr.rel (%p261) target = $region24
        $region23: #{tpu_custom_call.1} parent=11 // pred_region
          %s265 = ssub.s32 2048, 2048
          %266 = vsyncadd [#allocation3], %s265
          %s267 = sshll.u32 [#allocation2], 4
          %s268 = int_to_ptr.vmem [resolvable:$true] %s267
          %273 = dma.hbm_to_vmem [thread:$0]  %s3, 2048, %s268, [#allocation3], 128, 128, 8
        $region24: #{tpu_custom_call.1} parent=11 // pred_fallthru
          _
        // Predicated region
        $region25: #{tpu_custom_call.1} parent=11 // pred_check
          %p274 = pneg %p130
        $region26: #{tpu_custom_call.1} parent=11 // pred_check_branch
          %276 = sbr.rel (%p274) target = $region28
        $region27: #{tpu_custom_call.1} parent=11 // pred_region
          _
        $region28: #{tpu_custom_call.1} parent=11 // pred_fallthru
          _
        // Predicated region
        $region29: #{tpu_custom_call.1} parent=11 // pred_check
          %p277 = pneg %p151
        $region30: #{tpu_custom_call.1} parent=11 // pred_check_branch
          %279 = sbr.rel (%p277) target = $region32
        $region31: #{tpu_custom_call.1} parent=11 // pred_region
          %s281 = ssub.s32 2048, 2048
          %282 = vsyncadd [#allocation6], %s281
          %s283 = sshll.u32 [#allocation5], 4
          %s284 = int_to_ptr.vmem [resolvable:$true] %s283
          %289 = dma.hbm_to_vmem [thread:$0]  %s5, 2048, %s284, [#allocation6], 64, 64, 4
        $region32: #{tpu_custom_call.1} parent=11 // pred_fallthru
          _
        // Predicated region
        $region33: #{tpu_custom_call.1} parent=11 // pred_check
          %p290 = pneg %p172
        $region34: #{tpu_custom_call.1} parent=11 // pred_check_branch
          %292 = sbr.rel (%p290) target = $region36
        $region35: #{tpu_custom_call.1} parent=11 // pred_region
          _
        $region36: #{tpu_custom_call.1} parent=11 // pred_fallthru
          _
        // Predicated region
        $region37: #{tpu_custom_call.1} parent=11 // pred_check
          %p293 = pneg %p193
        $region38: #{tpu_custom_call.1} parent=11 // pred_check_branch
          %295 = sbr.rel (%p293) target = $region40
        $region39: #{tpu_custom_call.1} parent=11 // pred_region
          %s297 = ssub.s32 1024, 1024
          %298 = vsyncadd [#allocation6], %s297
          %s299 = sshll.u32 [#allocation7], 4
          %s300 = int_to_ptr.vmem [resolvable:$true] %s299
          %305 = dma.hbm_to_vmem [thread:$0]  %s7, 1024, %s300, [#allocation6], 64, 64, 4
        $region40: #{tpu_custom_call.1} parent=11 // pred_fallthru
          _
        // Predicated region
        $region41: #{tpu_custom_call.1} parent=11 // pred_check
          %p306 = pneg %p214
        $region42: #{tpu_custom_call.1} parent=11 // pred_check_branch
          %308 = sbr.rel (%p306) target = $region44
        $region43: #{tpu_custom_call.1} parent=11 // pred_region
          _
        $region44: #{tpu_custom_call.1} parent=11 // pred_fallthru
          _
      $region12: #{tpu_custom_call.1} parent=5 // pred_fallthru
        _
      %p309 = scmp.lt.s32.totalorder %s20, 4
      // Predicated region
      $region45: #{tpu_custom_call.1} parent=5 // pred_check
        %p310 = pneg %p309
      $region46: #{tpu_custom_call.1} parent=5 // pred_check_branch
        %312 = sbr.rel (%p310) target = $region48
      $region47: #{tpu_custom_call.1} parent=5 // pred_region
        // Predicated region
        $region49: #{tpu_custom_call.1} parent=47 // pred_check
          %p313 = pneg %p40
        $region50: #{tpu_custom_call.1} parent=47 // pred_check_branch
          %315 = sbr.rel (%p313) target = $region52
        $region51: #{tpu_custom_call.1} parent=47 // pred_region
          %s316 = smul.u32 2, %s20
          %p317 = scmp.lt.s32.totalorder %s316, 7
          %s318 = scalar_select %p317, %s316, 7
          %s319 = smul.addr %s318, 4
          %s320 = scalar_lea.vmem %s0, %s319
          %s321 = smul.u32 2, %s20
        $region52: #{tpu_custom_call.1} parent=47 // pred_fallthru
          _
      $region48: #{tpu_custom_call.1} parent=5 // pred_fallthru
        _
      %p322 = scmp.le.s32.totalorder 1, %s20
      %p323 = scmp.lt.s32.totalorder %s20, 5
      %p324 = pnand %p322, %p323
      %p325 = pneg %p324
      // Predicated region
      $region53: #{tpu_custom_call.1} parent=5 // pred_check
        _
      $region54: #{tpu_custom_call.1} parent=5 // pred_check_branch
        %327 = sbr.rel (%p324) target = $region56
      $region55: #{tpu_custom_call.1} parent=5 // pred_region
        %s328 = ssub.s32 %s20, 1
        // Predicated region
        $region57: #{tpu_custom_call.1} parent=55 // pred_check
          %p329 = pneg %p109
        $region58: #{tpu_custom_call.1} parent=55 // pred_check_branch
          %331 = sbr.rel (%p329) target = $region60
        $region59: #{tpu_custom_call.1} parent=55 // pred_region
          %332 = dma.done [#allocation3], 2048
        $region60: #{tpu_custom_call.1} parent=55 // pred_fallthru
          _
        // Predicated region
        $region61: #{tpu_custom_call.1} parent=55 // pred_check
          %p333 = pneg %p151
        $region62: #{tpu_custom_call.1} parent=55 // pred_check_branch
          %335 = sbr.rel (%p333) target = $region64
        $region63: #{tpu_custom_call.1} parent=55 // pred_region
          %336 = dma.done [#allocation6], 2048
        $region64: #{tpu_custom_call.1} parent=55 // pred_fallthru
          _
        // Predicated region
        $region65: #{tpu_custom_call.1} parent=55 // pred_check
          %p337 = pneg %p193
        $region66: #{tpu_custom_call.1} parent=55 // pred_check_branch
          %339 = sbr.rel (%p337) target = $region68
        $region67: #{tpu_custom_call.1} parent=55 // pred_region
          %340 = dma.done [#allocation6], 1024
        $region68: #{tpu_custom_call.1} parent=55 // pred_fallthru
          _
        %s341 = smul.u32 2, %s25
        %p342 = scmp.lt.s32.totalorder %s341, 7
        %s343 = scalar_select %p342, %s341, 7
        %s344 = smul.addr %s343, 4
        %s345 = scalar_lea.vmem %s0, %s344
        %p346 = pneg %p46
        %p347 = pneg %p43
        %p348 = pneg %p67
        %p349 = pneg %p64
        %p350 = pneg %p88
        %p351 = pneg %p85
        %p352 = pneg %p109
        %p353 = pneg %p106
        %p354 = pneg %p130
        %p355 = pneg %p127
        %p356 = pneg %p151
        %p357 = pneg %p148
        %p358 = pneg %p172
        %p359 = pneg %p169
        %p360 = pneg %p193
        %p361 = pneg %p190
        %p362 = pneg %p214
        %p363 = pneg %p211
        %p364 = pneg %p240
        %p365 = pneg %p237
        %s366 = sand.u32 %s227, 1
        %s367 = scalar_lea.sflag [#allocation4], %s366
        %s368 = sand.u32 %s227, 1
        %s369 = smul.addr %s368, 16
        %s370 = scalar_lea.vmem [#allocation8], %s369
        %s371 = smul.u32 2, %s25
        %p372 = scmp.lt.s32.totalorder %s371, 7
        %s373 = scalar_select %p372, %s371, 7
        %s374 = smul.addr %s373, 4
        %s375 = scalar_lea.vmem %s0, %s374
        %s376 = smul.u32 2, %s25
        %s377 = smul.u32 2, %s25
        %v379 = vld [vmem:[%s375] sm:$0xf]
        %v380 = vld [vmem:[%s375 + $0x4] sm:$0xf]
        %v381 = vld [vmem:[%s1] sm:$0xf]
        %v382 = vld [vmem:[%s1 + $0x4] sm:$0xf]
        %v383 = vld [vmem:[%s1 + $0x8] sm:$0xf]
        %v384 = vld [vmem:[%s1 + $0xc] sm:$0xf]
        %v385 = vld [vmem:[%s2] sm:$0x1]
        %v387 = vlaneseq
        %v388 = vshrl.u32 %v387, 7
        %v389 = vsub.s32 0, %v388
        %v390 = vrot.slane %v385, %v389
        %v394 = vunpack.c.l.b16 %v379
        %v395 = vunpack.c.l.b16 %v380
        %v396 = vpack.c.b16 %v395, %v394
        %v401 = vunpack.c.l.b16 %v381
        %v402 = vunpack.c.l.b16 %v382
        %v403 = vunpack.c.l.b16 %v383
        %v404 = vunpack.c.l.b16 %v384
        %v405 = vpack.c.b16 %v402, %v401
        %v406 = vpack.c.b16 %v404, %v403
        %vm409 = vcmask 261120
        %v411 = vsel %vm409, %v396, 0
        %413 = vmatprep.subr.bf16.mxu0 0
        %414 = vmatpush1.bf16.msra.mxu0 0
        %415 = vmatprep.subr.bf16.mxu0 0
        %416 = vmatpush1.bf16.msra.mxu0 0
        %417 = vmatprep.subr.bf16.mxu0 0
        %418 = vmatpush1.bf16.msra.mxu0 0
        %419 = vmatprep.subr.bf16.mxu0 0
        %420 = vmatpush1.bf16.msra.mxu0 0
        %421 = vmatprep.subr.bf16.mxu0 0
        %422 = vmatpush1.bf16.msra.mxu0 0
        %423 = vmatprep.subr.bf16.mxu0 0
        %424 = vmatpush1.bf16.msra.mxu0 0
        %425 = vmatprep.subr.bf16.mxu0 0
        %426 = vmatpush1.bf16.msra.mxu0 %v406
        %427 = vmatprep.subr.bf16.mxu0 0
        %428 = vmatpush1.bf16.msra.mxu0 %v405
        %429 = vmatprep.subr.bf16.mxu0 0
        %430 = vmatpush2.bf16.msra.mxu0 0
        %431 = vmatprep.subr.bf16.mxu0 0
        %432 = vmatpush2.bf16.msra.mxu0 0
        %433 = vmatprep.subr.bf16.mxu0 0
        %434 = vmatpush2.bf16.msra.mxu0 0
        %435 = vmatprep.subr.bf16.mxu0 0
        %436 = vmatpush2.bf16.msra.mxu0 0
        %437 = vmatprep.subr.bf16.mxu0 0
        %438 = vmatpush2.bf16.msra.mxu0 0
        %439 = vmatprep.subr.bf16.mxu0 0
        %440 = vmatpush2.bf16.msra.mxu0 0
        %441 = vmatprep.subr.bf16.mxu0 0
        %442 = vmatpush2.bf16.msra.mxu0 0
        %443 = vmatprep.subr.bf16.mxu0 0
        %444 = vmatpush2.bf16.msra.mxu0 0
        %445 = vmatprep.mubr.bf16.mxu0 0
        %446 = vmatmul.mubr.bf16.gmra.mxu0 %v411
        %v447 = vpop.f32.mrf.mxu0
        %v448 = vadd.f32 %v390, %v447
        %v449 = vpop.f32.mrf.mxu0
        %v450 = vpop.f32.mrf.mxu0
        %v451 = vadd.f32 %v390, %v450
        %v452 = vpop.f32.mrf.mxu0
        %453 = vdwg.mxu0
        %v454 = vmax.f32 %v448, 0.0
        %v455 = vmax.f32 %v451, 0.0
        %v456 = vpack.c.bf16 %v455, %v454
        %v457 = vld [vmem:[#allocation2] sm:$0xff]
        %v458 = vld [vmem:[#allocation2 + $0x8] sm:$0xff]
        %v459 = vld [vmem:[#allocation2 + $0x10] sm:$0xff]
        %v460 = vld [vmem:[#allocation2 + $0x18] sm:$0xff]
        %v461 = vld [vmem:[#allocation2 + $0x20] sm:$0xff]
        %v462 = vld [vmem:[#allocation2 + $0x28] sm:$0xff]
        %v463 = vld [vmem:[#allocation2 + $0x30] sm:$0xff]
        %v464 = vld [vmem:[#allocation2 + $0x38] sm:$0xff]
        %v465 = vld [vmem:[#allocation2 + $0x40] sm:$0xff]
        %v466 = vld [vmem:[#allocation2 + $0x48] sm:$0xff]
        %v467 = vld [vmem:[#allocation2 + $0x50] sm:$0xff]
        %v468 = vld [vmem:[#allocation2 + $0x58] sm:$0xff]
        %v469 = vld [vmem:[#allocation2 + $0x60] sm:$0xff]
        %v470 = vld [vmem:[#allocation2 + $0x68] sm:$0xff]
        %v471 = vld [vmem:[#allocation2 + $0x70] sm:$0xff]
        %v472 = vld [vmem:[#allocation2 + $0x78] sm:$0xff]
        %v473 = vld [vmem:[%s4] sm:$0x3]
        %v475 = vlaneseq
        %v476 = vshrl.u32 %v475, 7
        %v477 = vsub.s32 0, %v476
        %v478 = vrot.slane %v473, %v477
        %v479 = vlaneseq
        %v480 = vshrl.u32 %v479, 7
        %v481 = vsub.s32 1, %v480
        %v482 = vrot.slane %v473, %v481
        %v501 = vunpack.c.l.b16 %v457
        %v502 = vunpack.c.h.b16 %v457
        %v503 = vunpack.c.l.b16 %v458
        %v504 = vunpack.c.h.b16 %v458
        %v505 = vunpack.c.l.b16 %v459
        %v506 = vunpack.c.h.b16 %v459
        %v507 = vunpack.c.l.b16 %v460
        %v508 = vunpack.c.h.b16 %v460
        %v509 = vunpack.c.l.b16 %v461
        %v510 = vunpack.c.h.b16 %v461
        %v511 = vunpack.c.l.b16 %v462
        %v512 = vunpack.c.h.b16 %v462
        %v513 = vunpack.c.l.b16 %v463
        %v514 = vunpack.c.h.b16 %v463
        %v515 = vunpack.c.l.b16 %v464
        %v516 = vunpack.c.h.b16 %v464
        %v517 = vunpack.c.l.b16 %v465
        %v518 = vunpack.c.h.b16 %v465
        %v519 = vunpack.c.l.b16 %v466
        %v520 = vunpack.c.h.b16 %v466
        %v521 = vunpack.c.l.b16 %v467
        %v522 = vunpack.c.h.b16 %v467
        %v523 = vunpack.c.l.b16 %v468
        %v524 = vunpack.c.h.b16 %v468
        %v525 = vunpack.c.l.b16 %v469
        %v526 = vunpack.c.h.b16 %v469
        %v527 = vunpack.c.l.b16 %v470
        %v528 = vunpack.c.h.b16 %v470
        %v529 = vunpack.c.l.b16 %v471
        %v530 = vunpack.c.h.b16 %v471
        %v531 = vunpack.c.l.b16 %v472
        %v532 = vunpack.c.h.b16 %v472
        %v533 = vpack.c.b16 %v503, %v501
        %v534 = vpack.c.b16 %v504, %v502
        %v535 = vpack.c.b16 %v507, %v505
        %v536 = vpack.c.b16 %v508, %v506
        %v537 = vpack.c.b16 %v511, %v509
        %v538 = vpack.c.b16 %v512, %v510
        %v539 = vpack.c.b16 %v515, %v513
        %v540 = vpack.c.b16 %v516, %v514
        %v541 = vpack.c.b16 %v519, %v517
        %v542 = vpack.c.b16 %v520, %v518
        %v543 = vpack.c.b16 %v523, %v521
        %v544 = vpack.c.b16 %v524, %v522
        %v545 = vpack.c.b16 %v527, %v525
        %v546 = vpack.c.b16 %v528, %v526
        %v547 = vpack.c.b16 %v531, %v529
        %v548 = vpack.c.b16 %v532, %v530
        %565 = vmatprep.subr.bf16.mxu0 %v548
        %566 = vmatpush1.bf16.msra.mxu0 %v547
        %567 = vmatprep.subr.bf16.mxu0 %v546
        %568 = vmatpush1.bf16.msra.mxu0 %v545
        %569 = vmatprep.subr.bf16.mxu0 %v544
        %570 = vmatpush1.bf16.msra.mxu0 %v543
        %571 = vmatprep.subr.bf16.mxu0 %v542
        %572 = vmatpush1.bf16.msra.mxu0 %v541
        %573 = vmatprep.subr.bf16.mxu0 %v540
        %574 = vmatpush1.bf16.msra.mxu0 %v539
        %575 = vmatprep.subr.bf16.mxu0 %v538
        %576 = vmatpush1.bf16.msra.mxu0 %v537
        %577 = vmatprep.subr.bf16.mxu0 %v536
        %578 = vmatpush1.bf16.msra.mxu0 %v535
        %579 = vmatprep.subr.bf16.mxu0 %v534
        %580 = vmatpush1.bf16.msra.mxu0 %v533
        %581 = vmatprep.subr.bf16.mxu0 0
        %582 = vmatpush2.bf16.msra.mxu0 0
        %583 = vmatprep.subr.bf16.mxu0 0
        %584 = vmatpush2.bf16.msra.mxu0 0
        %585 = vmatprep.subr.bf16.mxu0 0
        %586 = vmatpush2.bf16.msra.mxu0 0
        %587 = vmatprep.subr.bf16.mxu0 0
        %588 = vmatpush2.bf16.msra.mxu0 0
        %589 = vmatprep.subr.bf16.mxu0 0
        %590 = vmatpush2.bf16.msra.mxu0 0
        %591 = vmatprep.subr.bf16.mxu0 0
        %592 = vmatpush2.bf16.msra.mxu0 0
        %593 = vmatprep.subr.bf16.mxu0 0
        %594 = vmatpush2.bf16.msra.mxu0 0
        %595 = vmatprep.subr.bf16.mxu0 0
        %596 = vmatpush2.bf16.msra.mxu0 0
        %597 = vmatprep.mubr.bf16.mxu0 0
        %598 = vmatmul.mubr.bf16.gmra.mxu0 %v456
        %v599 = vpop.f32.mrf.mxu0
        %v600 = vadd.f32 %v478, %v599
        %v601 = vpop.f32.mrf.mxu0
        %v602 = vadd.f32 %v482, %v601
        %v603 = vpop.f32.mrf.mxu0
        %v604 = vadd.f32 %v478, %v603
        %v605 = vpop.f32.mrf.mxu0
        %v606 = vadd.f32 %v482, %v605
        %607 = vdwg.mxu0
        %v608 = vmax.f32 %v600, 0.0
        %v609 = vmax.f32 %v602, 0.0
        %v610 = vmax.f32 %v604, 0.0
        %v611 = vmax.f32 %v606, 0.0
        %v612 = vpack.c.bf16 %v610, %v608
        %v613 = vpack.c.bf16 %v611, %v609
        %v614 = vld [vmem:[#allocation5] sm:$0xf]
        %v615 = vld [vmem:[#allocation5 + $0x4] sm:$0xf]
        %v616 = vld [vmem:[#allocation5 + $0x8] sm:$0xf]
        %v617 = vld [vmem:[#allocation5 + $0xc] sm:$0xf]
        %v618 = vld [vmem:[#allocation5 + $0x10] sm:$0xf]
        %v619 = vld [vmem:[#allocation5 + $0x14] sm:$0xf]
        %v620 = vld [vmem:[#allocation5 + $0x18] sm:$0xf]
        %v621 = vld [vmem:[#allocation5 + $0x1c] sm:$0xf]
        %v622 = vld [vmem:[#allocation5 + $0x20] sm:$0xf]
        %v623 = vld [vmem:[#allocation5 + $0x24] sm:$0xf]
        %v624 = vld [vmem:[#allocation5 + $0x28] sm:$0xf]
        %v625 = vld [vmem:[#allocation5 + $0x2c] sm:$0xf]
        %v626 = vld [vmem:[#allocation5 + $0x30] sm:$0xf]
        %v627 = vld [vmem:[#allocation5 + $0x34] sm:$0xf]
        %v628 = vld [vmem:[#allocation5 + $0x38] sm:$0xf]
        %v629 = vld [vmem:[#allocation5 + $0x3c] sm:$0xf]
        %v630 = vld [vmem:[#allocation5 + $0x40] sm:$0xf]
        %v631 = vld [vmem:[#allocation5 + $0x44] sm:$0xf]
        %v632 = vld [vmem:[#allocation5 + $0x48] sm:$0xf]
        %v633 = vld [vmem:[#allocation5 + $0x4c] sm:$0xf]
        %v634 = vld [vmem:[#allocation5 + $0x50] sm:$0xf]
        %v635 = vld [vmem:[#allocation5 + $0x54] sm:$0xf]
        %v636 = vld [vmem:[#allocation5 + $0x58] sm:$0xf]
        %v637 = vld [vmem:[#allocation5 + $0x5c] sm:$0xf]
        %v638 = vld [vmem:[#allocation5 + $0x60] sm:$0xf]
        %v639 = vld [vmem:[#allocation5 + $0x64] sm:$0xf]
        %v640 = vld [vmem:[#allocation5 + $0x68] sm:$0xf]
        %v641 = vld [vmem:[#allocation5 + $0x6c] sm:$0xf]
        %v642 = vld [vmem:[#allocation5 + $0x70] sm:$0xf]
        %v643 = vld [vmem:[#allocation5 + $0x74] sm:$0xf]
        %v644 = vld [vmem:[#allocation5 + $0x78] sm:$0xf]
        %v645 = vld [vmem:[#allocation5 + $0x7c] sm:$0xf]
        %v646 = vld [vmem:[%s6] sm:$0x1]
        %v648 = vlaneseq
        %v649 = vshrl.u32 %v648, 7
        %v650 = vsub.s32 0, %v649
        %v651 = vrot.slane %v646, %v650
        %v685 = vunpack.c.l.b16 %v614
        %v686 = vunpack.c.l.b16 %v615
        %v687 = vunpack.c.l.b16 %v616
        %v688 = vunpack.c.l.b16 %v617
        %v689 = vunpack.c.l.b16 %v618
        %v690 = vunpack.c.l.b16 %v619
        %v691 = vunpack.c.l.b16 %v620
        %v692 = vunpack.c.l.b16 %v621
        %v693 = vunpack.c.l.b16 %v622
        %v694 = vunpack.c.l.b16 %v623
        %v695 = vunpack.c.l.b16 %v624
        %v696 = vunpack.c.l.b16 %v625
        %v697 = vunpack.c.l.b16 %v626
        %v698 = vunpack.c.l.b16 %v627
        %v699 = vunpack.c.l.b16 %v628
        %v700 = vunpack.c.l.b16 %v629
        %v701 = vunpack.c.l.b16 %v630
        %v702 = vunpack.c.l.b16 %v631
        %v703 = vunpack.c.l.b16 %v632
        %v704 = vunpack.c.l.b16 %v633
        %v705 = vunpack.c.l.b16 %v634
        %v706 = vunpack.c.l.b16 %v635
        %v707 = vunpack.c.l.b16 %v636
        %v708 = vunpack.c.l.b16 %v637
        %v709 = vunpack.c.l.b16 %v638
        %v710 = vunpack.c.l.b16 %v639
        %v711 = vunpack.c.l.b16 %v640
        %v712 = vunpack.c.l.b16 %v641
        %v713 = vunpack.c.l.b16 %v642
        %v714 = vunpack.c.l.b16 %v643
        %v715 = vunpack.c.l.b16 %v644
        %v716 = vunpack.c.l.b16 %v645
        %v717 = vpack.c.b16 %v686, %v685
        %v718 = vpack.c.b16 %v688, %v687
        %v719 = vpack.c.b16 %v690, %v689
        %v720 = vpack.c.b16 %v692, %v691
        %v721 = vpack.c.b16 %v694, %v693
        %v722 = vpack.c.b16 %v696, %v695
        %v723 = vpack.c.b16 %v698, %v697
        %v724 = vpack.c.b16 %v700, %v699
        %v725 = vpack.c.b16 %v702, %v701
        %v726 = vpack.c.b16 %v704, %v703
        %v727 = vpack.c.b16 %v706, %v705
        %v728 = vpack.c.b16 %v708, %v707
        %v729 = vpack.c.b16 %v710, %v709
        %v730 = vpack.c.b16 %v712, %v711
        %v731 = vpack.c.b16 %v714, %v713
        %v732 = vpack.c.b16 %v716, %v715
        %749 = vmatprep.subr.bf16.mxu0 0
        %750 = vmatpush1.bf16.msra.mxu0 %v724
        %751 = vmatprep.subr.bf16.mxu0 0
        %752 = vmatpush1.bf16.msra.mxu0 %v723
        %753 = vmatprep.subr.bf16.mxu0 0
        %754 = vmatpush1.bf16.msra.mxu0 %v722
        %755 = vmatprep.subr.bf16.mxu0 0
        %756 = vmatpush1.bf16.msra.mxu0 %v721
        %757 = vmatprep.subr.bf16.mxu0 0
        %758 = vmatpush1.bf16.msra.mxu0 %v720
        %759 = vmatprep.subr.bf16.mxu0 0
        %760 = vmatpush1.bf16.msra.mxu0 %v719
        %761 = vmatprep.subr.bf16.mxu0 0
        %762 = vmatpush1.bf16.msra.mxu0 %v718
        %763 = vmatprep.subr.bf16.mxu0 0
        %764 = vmatpush1.bf16.msra.mxu0 %v717
        %765 = vmatprep.subr.bf16.mxu0 0
        %766 = vmatpush2.bf16.msra.mxu0 %v732
        %767 = vmatprep.subr.bf16.mxu0 0
        %768 = vmatpush2.bf16.msra.mxu0 %v731
        %769 = vmatprep.subr.bf16.mxu0 0
        %770 = vmatpush2.bf16.msra.mxu0 %v730
        %771 = vmatprep.subr.bf16.mxu0 0
        %772 = vmatpush2.bf16.msra.mxu0 %v729
        %773 = vmatprep.subr.bf16.mxu0 0
        %774 = vmatpush2.bf16.msra.mxu0 %v728
        %775 = vmatprep.subr.bf16.mxu0 0
        %776 = vmatpush2.bf16.msra.mxu0 %v727
        %777 = vmatprep.subr.bf16.mxu0 0
        %778 = vmatpush2.bf16.msra.mxu0 %v726
        %779 = vmatprep.subr.bf16.mxu0 0
        %780 = vmatpush2.bf16.msra.mxu0 %v725
        %781 = vmatprep.mubr.bf16.mxu0 %v613
        %782 = vmatmul.mubr.bf16.gmra.mxu0 %v612
        %v783 = vpop.f32.mrf.mxu0
        %v784 = vadd.f32 %v651, %v783
        %v785 = vpop.f32.mrf.mxu0
        %v786 = vpop.f32.mrf.mxu0
        %v787 = vadd.f32 %v651, %v786
        %v788 = vpop.f32.mrf.mxu0
        %789 = vdwg.mxu0
        %v790 = vmax.f32 %v784, 0.0
        %v791 = vmax.f32 %v787, 0.0
        %v792 = vpack.c.bf16 %v791, %v790
        %v793 = vld [vmem:[#allocation7] sm:$0xf]
        %v794 = vld [vmem:[#allocation7 + $0x4] sm:$0xf]
        %v795 = vld [vmem:[#allocation7 + $0x8] sm:$0xf]
        %v796 = vld [vmem:[#allocation7 + $0xc] sm:$0xf]
        %v797 = vld [vmem:[#allocation7 + $0x10] sm:$0xf]
        %v798 = vld [vmem:[#allocation7 + $0x14] sm:$0xf]
        %v799 = vld [vmem:[#allocation7 + $0x18] sm:$0xf]
        %v800 = vld [vmem:[#allocation7 + $0x1c] sm:$0xf]
        %v801 = vld [vmem:[#allocation7 + $0x20] sm:$0xf]
        %v802 = vld [vmem:[#allocation7 + $0x24] sm:$0xf]
        %v803 = vld [vmem:[#allocation7 + $0x28] sm:$0xf]
        %v804 = vld [vmem:[#allocation7 + $0x2c] sm:$0xf]
        %v805 = vld [vmem:[#allocation7 + $0x30] sm:$0xf]
        %v806 = vld [vmem:[#allocation7 + $0x34] sm:$0xf]
        %v807 = vld [vmem:[#allocation7 + $0x38] sm:$0xf]
        %v808 = vld [vmem:[#allocation7 + $0x3c] sm:$0xf]
        %v809 = vld [vmem:[%s8] sm:$0x1]
        %v811 = vlaneseq
        %v812 = vshrl.u32 %v811, 7
        %v813 = vsub.s32 0, %v812
        %v814 = vrot.slane %v809, %v813
        %v832 = vunpack.c.l.b16 %v793
        %v833 = vunpack.c.l.b16 %v794
        %v834 = vunpack.c.l.b16 %v795
        %v835 = vunpack.c.l.b16 %v796
        %v836 = vunpack.c.l.b16 %v797
        %v837 = vunpack.c.l.b16 %v798
        %v838 = vunpack.c.l.b16 %v799
        %v839 = vunpack.c.l.b16 %v800
        %v840 = vunpack.c.l.b16 %v801
        %v841 = vunpack.c.l.b16 %v802
        %v842 = vunpack.c.l.b16 %v803
        %v843 = vunpack.c.l.b16 %v804
        %v844 = vunpack.c.l.b16 %v805
        %v845 = vunpack.c.l.b16 %v806
        %v846 = vunpack.c.l.b16 %v807
        %v847 = vunpack.c.l.b16 %v808
        %v848 = vpack.c.b16 %v833, %v832
        %v849 = vpack.c.b16 %v835, %v834
        %v850 = vpack.c.b16 %v837, %v836
        %v851 = vpack.c.b16 %v839, %v838
        %v852 = vpack.c.b16 %v841, %v840
        %v853 = vpack.c.b16 %v843, %v842
        %v854 = vpack.c.b16 %v845, %v844
        %v855 = vpack.c.b16 %v847, %v846
        %864 = vmatprep.subr.bf16.mxu0 0
        %865 = vmatpush1.bf16.msra.mxu0 %v855
        %866 = vmatprep.subr.bf16.mxu0 0
        %867 = vmatpush1.bf16.msra.mxu0 %v854
        %868 = vmatprep.subr.bf16.mxu0 0
        %869 = vmatpush1.bf16.msra.mxu0 %v853
        %870 = vmatprep.subr.bf16.mxu0 0
        %871 = vmatpush1.bf16.msra.mxu0 %v852
        %872 = vmatprep.subr.bf16.mxu0 0
        %873 = vmatpush1.bf16.msra.mxu0 %v851
        %874 = vmatprep.subr.bf16.mxu0 0
        %875 = vmatpush1.bf16.msra.mxu0 %v850
        %876 = vmatprep.subr.bf16.mxu0 0
        %877 = vmatpush1.bf16.msra.mxu0 %v849
        %878 = vmatprep.subr.bf16.mxu0 0
        %879 = vmatpush1.bf16.msra.mxu0 %v848
        %880 = vmatprep.subr.bf16.mxu0 0
        %881 = vmatpush2.bf16.msra.mxu0 0
        %882 = vmatprep.subr.bf16.mxu0 0
        %883 = vmatpush2.bf16.msra.mxu0 0
        %884 = vmatprep.subr.bf16.mxu0 0
        %885 = vmatpush2.bf16.msra.mxu0 0
        %886 = vmatprep.subr.bf16.mxu0 0
        %887 = vmatpush2.bf16.msra.mxu0 0
        %888 = vmatprep.subr.bf16.mxu0 0
        %889 = vmatpush2.bf16.msra.mxu0 0
        %890 = vmatprep.subr.bf16.mxu0 0
        %891 = vmatpush2.bf16.msra.mxu0 0
        %892 = vmatprep.subr.bf16.mxu0 0
        %893 = vmatpush2.bf16.msra.mxu0 0
        %894 = vmatprep.subr.bf16.mxu0 0
        %895 = vmatpush2.bf16.msra.mxu0 0
        %896 = vmatprep.mubr.bf16.mxu0 0
        %897 = vmatmul.mubr.bf16.gmra.mxu0 %v792
        %v898 = vpop.f32.mrf.mxu0
        %v899 = vadd.f32 %v814, %v898
        %v900 = vpop.f32.mrf.mxu0
        %v901 = vpop.f32.mrf.mxu0
        %v902 = vadd.f32 %v814, %v901
        %v903 = vpop.f32.mrf.mxu0
        %904 = vdwg.mxu0
        %905 = vst [vmem:[%s370] sm:$0xff] %v899
        %906 = vst [vmem:[%s370 + $0x8] sm:$0xff] %v902
        %s907 = sand.u32 %s227, 1
        %s908 = scalar_lea.sflag [#allocation4], %s907
        %s909 = sand.u32 %s227, 1
        %s910 = smul.addr %s909, 16
        %s911 = scalar_lea.vmem [#allocation8], %s910
        // Predicated region
        $region69: #{tpu_custom_call.1} parent=55 // pred_check
          %p912 = pneg %p237
        $region70: #{tpu_custom_call.1} parent=55 // pred_check_branch
          %914 = sbr.rel (%p912) target = $region72
        $region71: #{tpu_custom_call.1} parent=55 // pred_region
          %s915 = smul.u32 2, %s25
          %s917 = ssub.s32 256, 256
          %918 = vsyncadd %s908, %s917
          %s919 = smul.addr %s915, 128
          %s920 = scalar_lea.hbm %s9, %s919
          %s921 = sshll.u32 %s911, 4
          %s922 = int_to_ptr.vmem [resolvable:$true] %s921
          %927 = dma.vmem_to_hbm [thread:$0]  %s922, 256, %s920, %s908, 128, 128, 8
        $region72: #{tpu_custom_call.1} parent=55 // pred_fallthru
          _
      $region56: #{tpu_custom_call.1} parent=5 // pred_fallthru
        _
      %p928 = scmp.le.s32.totalorder 2, %s20
      // Predicated region
      $region73: #{tpu_custom_call.1} parent=5 // pred_check
        %p929 = pneg %p928
      $region74: #{tpu_custom_call.1} parent=5 // pred_check_branch
        %931 = sbr.rel (%p929) target = $region76
      $region75: #{tpu_custom_call.1} parent=5 // pred_region
        %s932 = ssub.s32 %s20, 2
        // Predicated region
        $region77: #{tpu_custom_call.1} parent=75 // pred_check
          %p933 = pneg %p243
        $region78: #{tpu_custom_call.1} parent=75 // pred_check_branch
          %935 = sbr.rel (%p933) target = $region80
        $region79: #{tpu_custom_call.1} parent=75 // pred_region
          %s936 = sand.u32 %s228, 1
          %s937 = scalar_lea.sflag [#allocation4], %s936
          %s938 = sand.u32 %s228, 1
          %s939 = smul.addr %s938, 16
          %s940 = scalar_lea.vmem [#allocation8], %s939
          %941 = dma.done %s937, 256
        $region80: #{tpu_custom_call.1} parent=75 // pred_fallthru
          _
      $region76: #{tpu_custom_call.1} parent=5 // pred_fallthru
        _
    $region6: #{tpu_custom_call.1} parent=1 // loop_footer
      %s24 = sadd.s32 1, %s20
    $region7: #{tpu_custom_call.1} parent=1 // loop_footer_branch
      %19 = sbr.rel target = $region3
    $region8: #{tpu_custom_call.1} parent=1 // loop_exit
      _
    %942 = vsyncpa [#allocation3], 1
    %s943 = scalar_lea.sflag [#allocation3], 1
    %944 = vsyncpa %s943, 1
    %945 = vsyncpa [#allocation6], 1
    %946 = vsyncpa [#allocation4], 1
    %s947 = scalar_lea.sflag [#allocation4], 1
    %948 = vsyncpa %s947, 1

</llo_original>
